<compile_context>
chip_gen: v7x
topology: tpu7x:2x2x1
jax: 0.10.0
libtpu: 0.0.40
codegen_flags: <defaults>
</compile_context>

<pallas_src>
import functools

import jax
import jax.numpy as jnp
import numpy as np
from jax.experimental import pallas as pl
from jax.experimental.pallas import tpu as pltpu


def _round_up(x, m):
    return (x + m - 1) // m * m


def _vmem_capacity_bytes():
    try:
        return int(pltpu.get_tpu_info().vmem_capacity_bytes)
    except Exception:
        return 64 * 1024 * 1024  # conservative fallback (v7x per-core VMEM)


def _hh_kernel(x1_ref, x2_ref, w_ref, gamma_ref, beta_ref, o_ref,
               sum_ref, sq_ref, *cache, C, n_pt, n_total, eps, use_cache, small_c):
    # x1_ref/x2_ref/o_ref: (C, tile_p) f32 VMEM       w_ref: (C, C) f32 VMEM
    # gamma_ref/beta_ref:  (C, 1) f32 VMEM
    # sum_ref/sq_ref:      (C, 1) f32 VMEM scratch (persist across grid steps)
    # cache (optional):    (B*n_pt, C, tile_p) f32 VMEM scratch holding conv output
    ph = pl.program_id(0)   # 0 = batch statistics, 1 = normalize + store
    b = pl.program_id(1)
    pt = pl.program_id(2)

    @pl.when((ph == 0) & (b == 0) & (pt == 0))
    def _init():
        sum_ref[...] = jnp.zeros_like(sum_ref)
        sq_ref[...] = jnp.zeros_like(sq_ref)

    w = w_ref[...]  # (C, C)

    def conv_now():
        d = jnp.abs(x1_ref[...] - x2_ref[...])                       # (C, tile_p)
        if small_c:
            # Tiny C: keep it on the VPU as C broadcast-FMAs.
            y = w[:, 0:1] * d[0:1, :]
            for i in range(1, C):
                y = y + w[:, i:i + 1] * d[i:i + 1, :]
            return y
        return jnp.dot(w, d, preferred_element_type=jnp.float32)      # (C, tile_p)

    @pl.when(ph == 0)
    def _stats():
        y = conv_now()
        if use_cache:
            cache[0][b * n_pt + pt] = y
        sum_ref[...] += jnp.sum(y, axis=1, keepdims=True)
        sq_ref[...] += jnp.sum(y * y, axis=1, keepdims=True)

    @pl.when(ph == 1)
    def _normalize():
        inv_n = 1.0 / n_total
        mean = sum_ref[...] * inv_n                         # (C, 1)
        # TODO(synk): E[x^2]-mean^2 in plain f32 can cancel for very large means or
        # counts; switch to pilot-centered / compensated accumulation if needed.
        var = sq_ref[...] * inv_n - mean * mean             # biased variance
        inv_std = jax.lax.rsqrt(var + eps)
        scale = gamma_ref[...] * inv_std                    # (C, 1)
        shift = beta_ref[...] - mean * scale                # (C, 1)
        y = cache[0][b * n_pt + pt] if use_cache else conv_now()
        o_ref[...] = jnp.maximum(y * scale + shift, 0.0)


def hh_interation(hh1, hh2, conv_weight, conv_bias, bn_gamma, bn_beta, eps=1e-5):
    """Pallas forward of HH_Interation.

    hh1, hh2:    (B, C, H, W) f32
    conv_weight: (C, C, 1, 1) f32
    conv_bias:   (C,) -- accepted for API parity but mathematically removed by the
                 training-mode BatchNorm mean subtraction, so never used.
    bn_gamma, bn_beta: (C,) BatchNorm affine parameters.
    """
    del conv_bias  # no-op under training-mode BatchNorm mean subtraction
    B, C, H, W = hh1.shape
    P = H * W

    # --- per-generation VMEM budgets -------------------------------------------
    vmem_cap = _vmem_capacity_bytes()
    big_vmem = vmem_cap >= 96 * 1024 * 1024              # v5e/v6e (128 MiB) vs v7x (64 MiB)
    blk_budget = (6 if big_vmem else 2) * 1024 * 1024    # per input block slab
    cache_budget = (48 if big_vmem else 24) * 1024 * 1024

    # --- P tiling (lane-dense, multiple of 128) ---------------------------------
    c_pad = _round_up(C, 8)                               # sublane-padded channel count
    max_tp = max(128, (blk_budget // (c_pad * 4)) // 128 * 128)
    tile_p = min(_round_up(P, 128), max_tp)
    P_pad = _round_up(P, tile_p)
    n_pt = P_pad // tile_p

    # --- persistent conv-output cache (skips the phase-1 HBM re-read) -----------
    cache_bytes = B * n_pt * c_pad * tile_p * 4
    use_cache = cache_bytes <= cache_budget

    # --- prepare operands (free contiguous reshapes; zero-pad P if needed) ------
    x1 = hh1.reshape(B, C, P).astype(jnp.float32)
    x2 = hh2.reshape(B, C, P).astype(jnp.float32)
    if P_pad != P:
        pad = ((0, 0), (0, 0), (0, P_pad - P))
        x1 = jnp.pad(x1, pad)
        x2 = jnp.pad(x2, pad)
    w = conv_weight.reshape(C, C).astype(jnp.float32)
    gamma = bn_gamma.reshape(C, 1).astype(jnp.float32)
    beta = bn_beta.reshape(C, 1).astype(jnp.float32)

    # --- specs -------------------------------------------------------------------
    if use_cache:
        # Phase 1 reads the VMEM cache, so park the input block index at 0 to avoid
        # re-DMAing the inputs from HBM.
        in_map = lambda ph, b, pt: (b * (1 - ph), 0, pt * (1 - ph))
    else:
        in_map = lambda ph, b, pt: (b, 0, pt)
    # Output index parked at block 0 during the stats phase (never written there
    # before phase 1 tile 0 overwrites it), real stores only in phase 1.
    out_map = lambda ph, b, pt: (b * ph, 0, pt * ph)
    const_map2 = lambda ph, b, pt: (0, 0)

    scratch = [pltpu.VMEM((C, 1), jnp.float32), pltpu.VMEM((C, 1), jnp.float32)]
    if use_cache:
        scratch.append(pltpu.VMEM((B * n_pt, C, tile_p), jnp.float32))

    blk_bytes = c_pad * tile_p * 4
    need = (6 * blk_bytes                                  # 2 inputs x2 buf + out x2 buf
            + (cache_bytes if use_cache else 0)
            + 2 * c_pad * 128 * 4 + (1 << 20))
    vmem_limit = int(min(max(32 * 1024 * 1024, need + need // 4),
                         vmem_cap - 4 * 1024 * 1024))

    kernel = functools.partial(
        _hh_kernel, C=C, n_pt=n_pt, n_total=float(B * P), eps=float(eps),
        use_cache=use_cache, small_c=(C <= 8))

    grid_spec = pltpu.PrefetchScalarGridSpec(
        num_scalar_prefetch=0,
        grid=(2, B, n_pt),   # (phase, batch, P tiles)
        in_specs=[
            pl.BlockSpec((None, C, tile_p), in_map),
            pl.BlockSpec((None, C, tile_p), in_map),
            pl.BlockSpec((C, C), const_map2),
            pl.BlockSpec((C, 1), const_map2),
            pl.BlockSpec((C, 1), const_map2),
        ],
        out_specs=pl.BlockSpec((None, C, tile_p), out_map),
        scratch_shapes=scratch,
    )
    out = pl.pallas_call(
        kernel,
        out_shape=jax.ShapeDtypeStruct((B, C, P_pad), jnp.float32),
        grid_spec=grid_spec,
        compiler_params=pltpu.CompilerParams(
            # BatchNorm statistics couple every grid step, so all axes run
            # sequentially on one core (see TODO(synk) above for the v7x split).
            dimension_semantics=("arbitrary", "arbitrary", "arbitrary"),
            vmem_limit_bytes=vmem_limit),
    )(x1, x2, w, gamma, beta)

    return out[:, :, :P].reshape(B, C, H, W)


def _reference(hh1, hh2, conv_weight, conv_bias, bn_gamma, bn_beta, eps=1e-5):
    """Pure-JAX reference of the PyTorch forward (training-mode BatchNorm)."""
    d = jnp.abs(hh1 - hh2)
    y = jax.lax.conv_general_dilated(
        d, conv_weight, window_strides=(1, 1), padding=((0, 0), (0, 0)),
        dimension_numbers=("NCHW", "OIHW", "NCHW"))
    y = y + conv_bias[None, :, None, None]
    mean = y.mean(axis=(0, 2, 3), keepdims=True)
    var = ((y - mean) ** 2).mean(axis=(0, 2, 3), keepdims=True)  # biased
    yn = (y - mean) * jax.lax.rsqrt(var + eps)
    yn = yn * bn_gamma[None, :, None, None] + bn_beta[None, :, None, None]
    return jnp.maximum(yn, 0.0)


if __name__ == "__main__":
    key = jax.random.PRNGKey(0)
    k1, k2, kw, kb, kg, kbe = jax.random.split(key, 6)

    B, C, H, W = 2, 4, 16, 16
    hh1 = jax.random.normal(k1, (B, C, H, W), jnp.float32)
    hh2 = jax.random.normal(k2, (B, C, H, W), jnp.float32)

    fan_in = C  # 1x1 conv
    bound = 1.0 / np.sqrt(fan_in)
    conv_weight = jax.random.uniform(kw, (C, C, 1, 1), jnp.float32, -bound, bound)
    conv_bias = jax.random.uniform(kb, (C,), jnp.float32, -bound, bound)
    bn_gamma = 1.0 + 0.1 * jax.random.normal(kg, (C,), jnp.float32)
    bn_beta = 0.1 * jax.random.normal(kbe, (C,), jnp.float32)

    out = jax.block_until_ready(
        hh_interation(hh1, hh2, conv_weight, conv_bias, bn_gamma, bn_beta))
    ref = _reference(hh1, hh2, conv_weight, conv_bias, bn_gamma, bn_beta)
    assert out.shape == (B, C, H, W)
    np.testing.assert_allclose(np.asarray(out), np.asarray(ref),
                               atol=1e-4, rtol=1e-4)
    print("KERNEL_OK")
</pallas_src>

<mosaic_0001>
module attributes {stable_mosaic.version = 11 : i64} {
  func.func @_hh_kernel(%arg0: i32, %arg1: i32, %arg2: i32, %arg3: memref<1x4x256xf32, #tpu.memory_space<vmem>>, %arg4: memref<1x4x256xf32, #tpu.memory_space<vmem>>, %arg5: memref<4x4xf32, #tpu.memory_space<vmem>>, %arg6: memref<4x1xf32, #tpu.memory_space<vmem>>, %arg7: memref<4x1xf32, #tpu.memory_space<vmem>>, %arg8: memref<1x4x256xf32, #tpu.memory_space<vmem>>, %arg9: memref<4x1xf32, #tpu.memory_space<vmem>>, %arg10: memref<4x1xf32, #tpu.memory_space<vmem>>, %arg11: memref<2x4x256xf32, #tpu.memory_space<vmem>>) attributes {dimension_semantics = [#tpu.dimension_semantics<arbitrary>, #tpu.dimension_semantics<arbitrary>, #tpu.dimension_semantics<arbitrary>], iteration_bounds = array<i64: 2, 2, 1>, scalar_prefetch = 0 : i64, scratch_operands = 3 : i64, tpu.core_type = #tpu.core_type<tc>, window_params = [{transform_indices = @transform_0, window_bounds = array<i64: 1, 4, 256>}, {transform_indices = @transform_1, window_bounds = array<i64: 1, 4, 256>}, {pipeline_mode = #tpu.pipeline_mode<synchronous>, transform_indices = @transform_2, window_bounds = array<i64: 4, 4>}, {pipeline_mode = #tpu.pipeline_mode<synchronous>, transform_indices = @transform_3, window_bounds = array<i64: 4, 1>}, {pipeline_mode = #tpu.pipeline_mode<synchronous>, transform_indices = @transform_4, window_bounds = array<i64: 4, 1>}, {transform_indices = @transform_5, window_bounds = array<i64: 1, 4, 256>}]} {
    %c0_i32 = arith.constant 0 : i32
    %0 = arith.cmpi eq, %arg0, %c0_i32 : i32
    %c0_i32_0 = arith.constant 0 : i32
    %1 = arith.cmpi eq, %arg1, %c0_i32_0 : i32
    %2 = arith.andi %0, %1 : i1
    %c0_i32_1 = arith.constant 0 : i32
    %3 = arith.cmpi eq, %arg2, %c0_i32_1 : i32
    %4 = arith.andi %2, %3 : i1
    %5 = arith.extui %4 : i1 to i32
    %c0_i32_2 = arith.constant 0 : i32
    %6 = arith.cmpi ne, %5, %c0_i32_2 : i32
    scf.if %6 {
      %cst = arith.constant 0.000000e+00 : f32
      %14 = vector.broadcast %cst : f32 to vector<4x1xf32>
      %c0_7 = arith.constant 0 : index
      %c0_8 = arith.constant 0 : index
      %15 = vector.load %arg9[%c0_7, %c0_8] : memref<4x1xf32, #tpu.memory_space<vmem>>, vector<4x1xf32>
      tpu.vector_store %arg9[%c0_7, %c0_8], %14 {strides = array<i32>} : memref<4x1xf32, #tpu.memory_space<vmem>>, vector<4x1xf32>,
      %cst_9 = arith.constant 0.000000e+00 : f32
      %16 = vector.broadcast %cst_9 : f32 to vector<4x1xf32>
      %c0_10 = arith.constant 0 : index
      %c0_11 = arith.constant 0 : index
      %17 = vector.load %arg10[%c0_10, %c0_11] : memref<4x1xf32, #tpu.memory_space<vmem>>, vector<4x1xf32>
      tpu.vector_store %arg10[%c0_10, %c0_11], %16 {strides = array<i32>} : memref<4x1xf32, #tpu.memory_space<vmem>>, vector<4x1xf32>,
    } else {
    }
    %c0 = arith.constant 0 : index
    %c0_3 = arith.constant 0 : index
    %7 = vector.load %arg5[%c0, %c0_3] : memref<4x4xf32, #tpu.memory_space<vmem>>, vector<4x4xf32>
    %c0_i32_4 = arith.constant 0 : i32
    %8 = arith.cmpi eq, %arg0, %c0_i32_4 : i32
    %9 = arith.extui %8 : i1 to i32
    %c0_i32_5 = arith.constant 0 : i32
    %10 = arith.cmpi ne, %9, %c0_i32_5 : i32
    scf.if %10 {
      %c0_7 = arith.constant 0 : index
      %c0_8 = arith.constant 0 : index
      %c0_9 = arith.constant 0 : index
      %14 = vector.load %arg3[%c0_7, %c0_8, %c0_9] : memref<1x4x256xf32, #tpu.memory_space<vmem>>, vector<1x4x256xf32>
      %15 = vector.shape_cast %14 : vector<1x4x256xf32> to vector<4x256xf32>
      %c0_10 = arith.constant 0 : index
      %c0_11 = arith.constant 0 : index
      %c0_12 = arith.constant 0 : index
      %16 = vector.load %arg4[%c0_10, %c0_11, %c0_12] : memref<1x4x256xf32, #tpu.memory_space<vmem>>, vector<1x4x256xf32>
      %17 = vector.shape_cast %16 : vector<1x4x256xf32> to vector<4x256xf32>
      %18 = arith.subf %15, %17 : vector<4x256xf32>
      %19 = math.absf %18 : vector<4x256xf32>
      %20 = vector.extract_strided_slice %7 {offsets = [0, 0], sizes = [4, 1], strides = [1, 1]} : vector<4x4xf32> to vector<4x1xf32>
      %21 = vector.extract_strided_slice %19 {offsets = [0, 0], sizes = [1, 256], strides = [1, 1]} : vector<4x256xf32> to vector<1x256xf32>
      %22 = vector.broadcast %20 : vector<4x1xf32> to vector<4x256xf32>
      %23 = vector.broadcast %21 : vector<1x256xf32> to vector<4x256xf32>
      %24 = arith.mulf %22, %23 : vector<4x256xf32>
      %25 = vector.extract_strided_slice %7 {offsets = [0, 1], sizes = [4, 1], strides = [1, 1]} : vector<4x4xf32> to vector<4x1xf32>
      %26 = vector.extract_strided_slice %19 {offsets = [1, 0], sizes = [1, 256], strides = [1, 1]} : vector<4x256xf32> to vector<1x256xf32>
      %27 = vector.broadcast %25 : vector<4x1xf32> to vector<4x256xf32>
      %28 = vector.broadcast %26 : vector<1x256xf32> to vector<4x256xf32>
      %29 = arith.mulf %27, %28 : vector<4x256xf32>
      %30 = arith.addf %24, %29 : vector<4x256xf32>
      %31 = vector.extract_strided_slice %7 {offsets = [0, 2], sizes = [4, 1], strides = [1, 1]} : vector<4x4xf32> to vector<4x1xf32>
      %32 = vector.extract_strided_slice %19 {offsets = [2, 0], sizes = [1, 256], strides = [1, 1]} : vector<4x256xf32> to vector<1x256xf32>
      %33 = vector.broadcast %31 : vector<4x1xf32> to vector<4x256xf32>
      %34 = vector.broadcast %32 : vector<1x256xf32> to vector<4x256xf32>
      %35 = arith.mulf %33, %34 : vector<4x256xf32>
      %36 = arith.addf %30, %35 : vector<4x256xf32>
      %37 = vector.extract_strided_slice %7 {offsets = [0, 3], sizes = [4, 1], strides = [1, 1]} : vector<4x4xf32> to vector<4x1xf32>
      %38 = vector.extract_strided_slice %19 {offsets = [3, 0], sizes = [1, 256], strides = [1, 1]} : vector<4x256xf32> to vector<1x256xf32>
      %39 = vector.broadcast %37 : vector<4x1xf32> to vector<4x256xf32>
      %40 = vector.broadcast %38 : vector<1x256xf32> to vector<4x256xf32>
      %41 = arith.mulf %39, %40 : vector<4x256xf32>
      %42 = arith.addf %36, %41 : vector<4x256xf32>
      %c1_i32_13 = arith.constant 1 : i32
      %43 = arith.muli %arg1, %c1_i32_13 : i32
      %44 = arith.addi %43, %arg2 : i32
      %45 = arith.index_cast %44 : i32 to index
      %c0_14 = arith.constant 0 : index
      %c0_15 = arith.constant 0 : index
      %46 = vector.load %arg11[%45, %c0_14, %c0_15] : memref<2x4x256xf32, #tpu.memory_space<vmem>>, vector<1x4x256xf32>
      %47 = vector.shape_cast %46 : vector<1x4x256xf32> to vector<4x256xf32>
      %48 = vector.shape_cast %42 : vector<4x256xf32> to vector<1x4x256xf32>
      tpu.vector_store %arg11[%45, %c0_14, %c0_15], %48 {strides = array<i32>} : memref<2x4x256xf32, #tpu.memory_space<vmem>>, vector<1x4x256xf32>,
      %c0_16 = arith.constant 0 : index
      %c0_17 = arith.constant 0 : index
      %49 = vector.load %arg9[%c0_16, %c0_17] : memref<4x1xf32, #tpu.memory_space<vmem>>, vector<4x1xf32>
      %cst = arith.constant dense<0.000000e+00> : vector<4xf32>
      %50 = vector.multi_reduction <add>, %42, %cst [1] : vector<4x256xf32> to vector<4xf32>
      %51 = vector.shape_cast %50 : vector<4xf32> to vector<4x1xf32>
      %52 = arith.addf %49, %51 : vector<4x1xf32>
      %c0_18 = arith.constant 0 : index
      %c0_19 = arith.constant 0 : index
      %53 = vector.load %arg9[%c0_18, %c0_19] : memref<4x1xf32, #tpu.memory_space<vmem>>, vector<4x1xf32>
      tpu.vector_store %arg9[%c0_18, %c0_19], %52 {strides = array<i32>} : memref<4x1xf32, #tpu.memory_space<vmem>>, vector<4x1xf32>,
      %c0_20 = arith.constant 0 : index
      %c0_21 = arith.constant 0 : index
      %54 = vector.load %arg10[%c0_20, %c0_21] : memref<4x1xf32, #tpu.memory_space<vmem>>, vector<4x1xf32>
      %55 = arith.mulf %42, %42 : vector<4x256xf32>
      %cst_22 = arith.constant dense<0.000000e+00> : vector<4xf32>
      %56 = vector.multi_reduction <add>, %55, %cst_22 [1] : vector<4x256xf32> to vector<4xf32>
      %57 = vector.shape_cast %56 : vector<4xf32> to vector<4x1xf32>
      %58 = arith.addf %54, %57 : vector<4x1xf32>
      %c0_23 = arith.constant 0 : index
      %c0_24 = arith.constant 0 : index
      %59 = vector.load %arg10[%c0_23, %c0_24] : memref<4x1xf32, #tpu.memory_space<vmem>>, vector<4x1xf32>
      tpu.vector_store %arg10[%c0_23, %c0_24], %58 {strides = array<i32>} : memref<4x1xf32, #tpu.memory_space<vmem>>, vector<4x1xf32>,
    } else {
    }
    %c1_i32 = arith.constant 1 : i32
    %11 = arith.cmpi eq, %arg0, %c1_i32 : i32
    %12 = arith.extui %11 : i1 to i32
    %c0_i32_6 = arith.constant 0 : i32
    %13 = arith.cmpi ne, %12, %c0_i32_6 : i32
    scf.if %13 {
      %c0_7 = arith.constant 0 : index
      %c0_8 = arith.constant 0 : index
      %14 = vector.load %arg9[%c0_7, %c0_8] : memref<4x1xf32, #tpu.memory_space<vmem>>, vector<4x1xf32>
      %cst = arith.constant 0.001953125 : f32
      %15 = vector.broadcast %cst : f32 to vector<4x1xf32>
      %16 = arith.mulf %14, %15 : vector<4x1xf32>
      %c0_9 = arith.constant 0 : index
      %c0_10 = arith.constant 0 : index
      %17 = vector.load %arg10[%c0_9, %c0_10] : memref<4x1xf32, #tpu.memory_space<vmem>>, vector<4x1xf32>
      %cst_11 = arith.constant 0.001953125 : f32
      %18 = vector.broadcast %cst_11 : f32 to vector<4x1xf32>
      %19 = arith.mulf %17, %18 : vector<4x1xf32>
      %20 = arith.mulf %16, %16 : vector<4x1xf32>
      %21 = arith.subf %19, %20 : vector<4x1xf32>
      %cst_12 = arith.constant 9.99999974E-6 : f32
      %22 = vector.broadcast %cst_12 : f32 to vector<4x1xf32>
      %23 = arith.addf %21, %22 : vector<4x1xf32>
      %24 = math.rsqrt %23 : vector<4x1xf32>
      %c0_13 = arith.constant 0 : index
      %c0_14 = arith.constant 0 : index
      %25 = vector.load %arg6[%c0_13, %c0_14] : memref<4x1xf32, #tpu.memory_space<vmem>>, vector<4x1xf32>
      %26 = arith.mulf %25, %24 : vector<4x1xf32>
      %c0_15 = arith.constant 0 : index
      %c0_16 = arith.constant 0 : index
      %27 = vector.load %arg7[%c0_15, %c0_16] : memref<4x1xf32, #tpu.memory_space<vmem>>, vector<4x1xf32>
      %28 = arith.mulf %16, %26 : vector<4x1xf32>
      %29 = arith.subf %27, %28 : vector<4x1xf32>
      %c1_i32_17 = arith.constant 1 : i32
      %30 = arith.muli %arg1, %c1_i32_17 : i32
      %31 = arith.addi %30, %arg2 : i32
      %32 = arith.index_cast %31 : i32 to index
      %c0_18 = arith.constant 0 : index
      %c0_19 = arith.constant 0 : index
      %33 = vector.load %arg11[%32, %c0_18, %c0_19] : memref<2x4x256xf32, #tpu.memory_space<vmem>>, vector<1x4x256xf32>
      %34 = vector.shape_cast %33 : vector<1x4x256xf32> to vector<4x256xf32>
      %35 = vector.broadcast %26 : vector<4x1xf32> to vector<4x256xf32>
      %36 = arith.mulf %34, %35 : vector<4x256xf32>
      %37 = vector.broadcast %29 : vector<4x1xf32> to vector<4x256xf32>
      %38 = arith.addf %36, %37 : vector<4x256xf32>
      %cst_20 = arith.constant 0.000000e+00 : f32
      %39 = vector.broadcast %cst_20 : f32 to vector<4x256xf32>
      %40 = arith.maximumf %38, %39 : vector<4x256xf32>
      %c0_21 = arith.constant 0 : index
      %c0_22 = arith.constant 0 : index
      %c0_23 = arith.constant 0 : index
      %41 = vector.load %arg8[%c0_21, %c0_22, %c0_23] : memref<1x4x256xf32, #tpu.memory_space<vmem>>, vector<1x4x256xf32>
      %42 = vector.shape_cast %41 : vector<1x4x256xf32> to vector<4x256xf32>
      %43 = vector.shape_cast %40 : vector<4x256xf32> to vector<1x4x256xf32>
      tpu.vector_store %arg8[%c0_21, %c0_22, %c0_23], %43 {strides = array<i32>} : memref<1x4x256xf32, #tpu.memory_space<vmem>>, vector<1x4x256xf32>,
    } else {
    }
    return
  }
  func.func @transform_0(%arg0: i32, %arg1: i32, %arg2: i32) -> (i32, i32, i32) {
    %c1_i32 = arith.constant 1 : i32
    %0 = arith.subi %c1_i32, %arg0 : i32
    %1 = arith.muli %arg1, %0 : i32
    %c1_i32_0 = arith.constant 1 : i32
    %2 = arith.subi %c1_i32_0, %arg0 : i32
    %3 = arith.muli %arg2, %2 : i32
    %c0_i32 = arith.constant 0 : i32
    %c0_i32_1 = arith.constant 0 : i32
    return %1, %c0_i32, %3 : i32, i32, i32
  }
  func.func @transform_1(%arg0: i32, %arg1: i32, %arg2: i32) -> (i32, i32, i32) {
    %c1_i32 = arith.constant 1 : i32
    %0 = arith.subi %c1_i32, %arg0 : i32
    %1 = arith.muli %arg1, %0 : i32
    %c1_i32_0 = arith.constant 1 : i32
    %2 = arith.subi %c1_i32_0, %arg0 : i32
    %3 = arith.muli %arg2, %2 : i32
    %c0_i32 = arith.constant 0 : i32
    %c0_i32_1 = arith.constant 0 : i32
    return %1, %c0_i32, %3 : i32, i32, i32
  }
  func.func @transform_2(%arg0: i32, %arg1: i32, %arg2: i32) -> (i32, i32) {
    %c0_i32 = arith.constant 0 : i32
    %c0_i32_0 = arith.constant 0 : i32
    %c0_i32_1 = arith.constant 0 : i32
    return %c0_i32, %c0_i32_0 : i32, i32
  }
  func.func @transform_3(%arg0: i32, %arg1: i32, %arg2: i32) -> (i32, i32) {
    %c0_i32 = arith.constant 0 : i32
    %c0_i32_0 = arith.constant 0 : i32
    %c0_i32_1 = arith.constant 0 : i32
    return %c0_i32, %c0_i32_0 : i32, i32
  }
  func.func @transform_4(%arg0: i32, %arg1: i32, %arg2: i32) -> (i32, i32) {
    %c0_i32 = arith.constant 0 : i32
    %c0_i32_0 = arith.constant 0 : i32
    %c0_i32_1 = arith.constant 0 : i32
    return %c0_i32, %c0_i32_0 : i32, i32
  }
  func.func @transform_5(%arg0: i32, %arg1: i32, %arg2: i32) -> (i32, i32, i32) {
    %0 = arith.muli %arg1, %arg0 : i32
    %1 = arith.muli %arg2, %arg0 : i32
    %c0_i32 = arith.constant 0 : i32
    %c0_i32_0 = arith.constant 0 : i32
    return %0, %c0_i32, %1 : i32, i32, i32
  }
}

</mosaic_0001>

<llo_original>
// kernel: tpu_custom_call.1
$region0: #{tpu_custom_call.1}
  #allocation0 [shape = 'u32[]', space=smem, size = 0x4, offset = 0x4, fixed_abs, tag = 'smem constant byte address 0x4 - core index']
  #allocation1 [shape = 'u32[144,128]{1,0:T(1,128)}', space=vmem, size = 0x12000, scoped, tag = 'internal scratch']
  #allocation2 [shape = 'f32[4,1]{1,0:T(4,128)}', space=vmem, size = 0x800, scoped, tag = 'scratch operand']
  #allocation3 [shape = 'f32[4,1]{1,0:T(4,128)}', space=vmem, size = 0x800, scoped, tag = 'scratch operand']
  #allocation4 [shape = 'f32[2,4,256]{2,1,0:T(4,128)}', space=vmem, size = 0x2000, scoped, tag = 'scratch operand']
  %s0 = inlined_call_operand.hbm [shape: f32[2,4,256], index: 0, kind: input, shape index: {}]
  %s1 = inlined_call_operand.hbm [shape: f32[2,4,256], index: 1, kind: input, shape index: {}]
  %s2 = inlined_call_operand.vmem [shape: f32[4,4], index: 2, kind: input, shape index: {}]
  %s3 = inlined_call_operand.vmem [shape: f32[4,1], index: 3, kind: input, shape index: {}]
  %s4 = inlined_call_operand.vmem [shape: f32[4,1], index: 4, kind: input, shape index: {}]
  %s5 = inlined_call_operand.hbm [shape: f32[2,4,256], index: 5, kind: output, shape index: {}]
  %s6 = sld [smem:[#allocation0]]
  $region73: #{tpu_custom_call.1} parent=0
    _
  %s8 = ssub.s32 1, %s6
  %s9 = scalar_select 0, %s8, %s6
  $region1: #{tpu_custom_call.1} parent=0
    #allocation5 [shape = 'u8[8192]{0}', space=vmem, size = 0x2000, scoped, tag = 'input window, operand 0']
    #allocation6 [shape = 's32[2]{0}', space=sflag, size = 0x8, scoped, tag = 'scoped memory for tpu_custom_call.1']
    #allocation7 [shape = 's32[2]{0}', space=sflag, size = 0x8, scoped, tag = 'scoped memory for tpu_custom_call.1']
    #allocation8 [shape = 'u8[8192]{0}', space=vmem, size = 0x2000, scoped, tag = 'input window, operand 1']
    #allocation9 [shape = 's32[2]{0}', space=sflag, size = 0x8, scoped, tag = 'scoped memory for tpu_custom_call.1']
    #allocation10 [shape = 'u8[8192]{0}', space=vmem, size = 0x2000, scoped, tag = 'output window, operand 0']
    %10 = vsyncpa [#allocation6], 0
    %s11 = scalar_lea.sflag [#allocation6], 1
    %12 = vsyncpa %s11, 0
    %13 = vsyncpa [#allocation9], 0
    %s14 = scalar_lea.sflag [#allocation9], 1
    %15 = vsyncpa %s14, 0
    %16 = vsyncpa [#allocation7], 0
    %s17 = scalar_lea.sflag [#allocation7], 1
    %18 = vsyncpa %s17, 0
    loop: start=0, step=1, limit=6
    $region2: #{tpu_custom_call.1} parent=1 // loop_pre_header
      _
    $region3: #{tpu_custom_call.1} parent=1 // loop_header
      %s20 = sphi 0, %s24
      %p21 = scmp.ge.s32.totalorder %s20, 6
      %s27 = sphi 0, %s46
      %s28 = sphi 0, %s42
      %s29 = sphi 0, %s38
      %s30 = sphi 0, %s27
      %s31 = sphi 0, %s28
      %s32 = sphi 0, %s29
      %s33 = sphi 0, %s30
      %s34 = sphi 0, %s31
      %s35 = sphi 0, %s32
      %s57 = sphi 0, %s59
      %s60 = sphi 0, %s57
      %s61 = sphi 0, %s60
      %s77 = sphi 0, %s61
      %s91 = sphi 0, %s93
      %s94 = sphi 0, %s91
      %s95 = sphi 0, %s94
      %s111 = sphi 0, %s95
      %s115 = sphi 0, %s115
      %s117 = sphi 0, %s115
      %s118 = sphi 0, %s117
      %s132 = sphi 0, %s118
      %s136 = sphi 0, %s136
      %s138 = sphi 0, %s136
      %s139 = sphi 0, %s138
      %s153 = sphi 0, %s139
      %s157 = sphi 0, %s157
      %s159 = sphi 0, %s157
      %s160 = sphi 0, %s159
      %s174 = sphi 0, %s160
      %s186 = sphi 0, %s188
      %s189 = sphi 0, %s186
      %s190 = sphi 0, %s189
      %s206 = sphi 0, %s190
    $region4: #{tpu_custom_call.1} parent=1 // loop_header_branch
      %23 = sbr.rel (%p21) target = $region8
    $region5: #{tpu_custom_call.1} parent=1 // loop_body
      %s25 = ssub.s32 %s20, 1
      %s26 = ssub.s32 %s20, 2
      %s36 = sadd.s32 1, %s29
      %p37 = scmp.ge.s32.totalorder %s36, 1
      %s38 = scalar_select %p37, 0, %s36
      %s39 = sadd.s32 1, %s28
      %s40 = scalar_select %p37, %s39, %s28
      %p41 = scmp.ge.s32.totalorder %s40, 2
      %s42 = scalar_select %p41, 0, %s40
      %s43 = sadd.s32 1, %s27
      %s44 = scalar_select %p41, %s43, %s27
      %p45 = scmp.ge.s32.totalorder %s44, 2
      %s46 = scalar_select %p45, 0, %s44
      %s47 = ssub.s32 1, %s27
      %s48 = smul.u32 %s28, %s47
      %s49 = smul.u32 %s29, %s47
      %s50 = ssub.s32 1, %s46
      %s51 = smul.u32 %s42, %s50
      %s52 = smul.u32 %s38, %s50
      %s53 = ssub.s32 %s48, %s51
      %s54 = ssub.s32 %s49, %s52
      %s55 = sor.u32 %s53, %s54
      %p56 = scmp.eq.s32.totalorder %s55, 0
      %s58 = sadd.s32 %s57, 1
      %s59 = scalar_select %p56, %s57, %s58
      %p62 = pneg %p56
      %p63 = scmp.eq.s32.totalorder %s20, 3
      %p64 = por %p62, %p63
      %p65 = scmp.ne.s32.totalorder %s57, %s60
      %p66 = scmp.eq.s32.totalorder %s20, 0
      %p67 = por %p65, %p66
      %p68 = scmp.ne.s32.totalorder %s57, %s60
      %p69 = scmp.eq.s32.totalorder %s25, 3
      %p70 = por %p68, %p69
      %p71 = scmp.ne.s32.totalorder %s60, %s61
      %p72 = scmp.eq.s32.totalorder %s25, 0
      %p73 = por %p71, %p72
      %p74 = scmp.ne.s32.totalorder %s60, %s61
      %p75 = scmp.eq.s32.totalorder %s26, 3
      %p76 = por %p74, %p75
      %p78 = scmp.ne.s32.totalorder %s61, %s77
      %p79 = scmp.eq.s32.totalorder %s26, 0
      %p80 = por %p78, %p79
      %s81 = ssub.s32 1, %s27
      %s82 = smul.u32 %s28, %s81
      %s83 = smul.u32 %s29, %s81
      %s84 = ssub.s32 1, %s46
      %s85 = smul.u32 %s42, %s84
      %s86 = smul.u32 %s38, %s84
      %s87 = ssub.s32 %s82, %s85
      %s88 = ssub.s32 %s83, %s86
      %s89 = sor.u32 %s87, %s88
      %p90 = scmp.eq.s32.totalorder %s89, 0
      %s92 = sadd.s32 %s91, 1
      %s93 = scalar_select %p90, %s91, %s92
      %p96 = pneg %p90
      %p97 = scmp.eq.s32.totalorder %s20, 3
      %p98 = por %p96, %p97
      %p99 = scmp.ne.s32.totalorder %s91, %s94
      %p100 = scmp.eq.s32.totalorder %s20, 0
      %p101 = por %p99, %p100
      %p102 = scmp.ne.s32.totalorder %s91, %s94
      %p103 = scmp.eq.s32.totalorder %s25, 3
      %p104 = por %p102, %p103
      %p105 = scmp.ne.s32.totalorder %s94, %s95
      %p106 = scmp.eq.s32.totalorder %s25, 0
      %p107 = por %p105, %p106
      %p108 = scmp.ne.s32.totalorder %s94, %s95
      %p109 = scmp.eq.s32.totalorder %s26, 3
      %p110 = por %p108, %p109
      %p112 = scmp.ne.s32.totalorder %s95, %s111
      %p113 = scmp.eq.s32.totalorder %s26, 0
      %p114 = por %p112, %p113
      %s116 = sadd.s32 %s115, 1
      %p119 = scmp.eq.s32.totalorder %s20, 3
      %p120 = scmp.ne.s32.totalorder %s115, %s117
      %p121 = scmp.eq.s32.totalorder %s20, 0
      %p122 = por %p120, %p121
      %p123 = scmp.ne.s32.totalorder %s115, %s117
      %p124 = scmp.eq.s32.totalorder %s25, 3
      %p125 = por %p123, %p124
      %p126 = scmp.ne.s32.totalorder %s117, %s118
      %p127 = scmp.eq.s32.totalorder %s25, 0
      %p128 = por %p126, %p127
      %p129 = scmp.ne.s32.totalorder %s117, %s118
      %p130 = scmp.eq.s32.totalorder %s26, 3
      %p131 = por %p129, %p130
      %p133 = scmp.ne.s32.totalorder %s118, %s132
      %p134 = scmp.eq.s32.totalorder %s26, 0
      %p135 = por %p133, %p134
      %s137 = sadd.s32 %s136, 1
      %p140 = scmp.eq.s32.totalorder %s20, 3
      %p141 = scmp.ne.s32.totalorder %s136, %s138
      %p142 = scmp.eq.s32.totalorder %s20, 0
      %p143 = por %p141, %p142
      %p144 = scmp.ne.s32.totalorder %s136, %s138
      %p145 = scmp.eq.s32.totalorder %s25, 3
      %p146 = por %p144, %p145
      %p147 = scmp.ne.s32.totalorder %s138, %s139
      %p148 = scmp.eq.s32.totalorder %s25, 0
      %p149 = por %p147, %p148
      %p150 = scmp.ne.s32.totalorder %s138, %s139
      %p151 = scmp.eq.s32.totalorder %s26, 3
      %p152 = por %p150, %p151
      %p154 = scmp.ne.s32.totalorder %s139, %s153
      %p155 = scmp.eq.s32.totalorder %s26, 0
      %p156 = por %p154, %p155
      %s158 = sadd.s32 %s157, 1
      %p161 = scmp.eq.s32.totalorder %s20, 3
      %p162 = scmp.ne.s32.totalorder %s157, %s159
      %p163 = scmp.eq.s32.totalorder %s20, 0
      %p164 = por %p162, %p163
      %p165 = scmp.ne.s32.totalorder %s157, %s159
      %p166 = scmp.eq.s32.totalorder %s25, 3
      %p167 = por %p165, %p166
      %p168 = scmp.ne.s32.totalorder %s159, %s160
      %p169 = scmp.eq.s32.totalorder %s25, 0
      %p170 = por %p168, %p169
      %p171 = scmp.ne.s32.totalorder %s159, %s160
      %p172 = scmp.eq.s32.totalorder %s26, 3
      %p173 = por %p171, %p172
      %p175 = scmp.ne.s32.totalorder %s160, %s174
      %p176 = scmp.eq.s32.totalorder %s26, 0
      %p177 = por %p175, %p176
      %s178 = smul.u32 %s28, %s27
      %s179 = smul.u32 %s29, %s27
      %s180 = smul.u32 %s42, %s46
      %s181 = smul.u32 %s38, %s46
      %s182 = ssub.s32 %s178, %s180
      %s183 = ssub.s32 %s179, %s181
      %s184 = sor.u32 %s182, %s183
      %p185 = scmp.eq.s32.totalorder %s184, 0
      %s187 = sadd.s32 %s186, 1
      %s188 = scalar_select %p185, %s186, %s187
      %p191 = pneg %p185
      %p192 = scmp.eq.s32.totalorder %s20, 3
      %p193 = por %p191, %p192
      %p194 = scmp.ne.s32.totalorder %s186, %s189
      %p195 = scmp.eq.s32.totalorder %s20, 0
      %p196 = por %p194, %p195
      %p197 = scmp.ne.s32.totalorder %s186, %s189
      %p198 = scmp.eq.s32.totalorder %s25, 3
      %p199 = por %p197, %p198
      %p200 = scmp.ne.s32.totalorder %s189, %s190
      %p201 = scmp.eq.s32.totalorder %s25, 0
      %p202 = por %p200, %p201
      %p203 = scmp.ne.s32.totalorder %s189, %s190
      %p204 = scmp.eq.s32.totalorder %s26, 3
      %p205 = por %p203, %p204
      %p207 = scmp.ne.s32.totalorder %s190, %s206
      %p208 = scmp.eq.s32.totalorder %s26, 0
      %p209 = por %p207, %p208
      %p210 = scmp.le.s32.totalorder 1, %s20
      %p211 = scmp.lt.s32.totalorder %s20, 5
      %p212 = pnand %p210, %p211
      %p213 = pneg %p212
      // Predicated region
      $region9: #{tpu_custom_call.1} parent=5 // pred_check
        _
      $region10: #{tpu_custom_call.1} parent=5 // pred_check_branch
        %215 = sbr.rel (%p212) target = $region12
      $region11: #{tpu_custom_call.1} parent=5 // pred_region
        %s216 = ssub.s32 %s20, 1
        // Predicated region
        $region13: #{tpu_custom_call.1} parent=11 // pred_check
          %p217 = pneg %p128
        $region14: #{tpu_custom_call.1} parent=11 // pred_check_branch
          %219 = sbr.rel (%p217) target = $region16
        $region15: #{tpu_custom_call.1} parent=11 // pred_region
          _
        $region16: #{tpu_custom_call.1} parent=11 // pred_fallthru
          _
        // Predicated region
        $region17: #{tpu_custom_call.1} parent=11 // pred_check
          %p220 = pneg %p149
        $region18: #{tpu_custom_call.1} parent=11 // pred_check_branch
          %222 = sbr.rel (%p220) target = $region20
        $region19: #{tpu_custom_call.1} parent=11 // pred_region
          _
        $region20: #{tpu_custom_call.1} parent=11 // pred_fallthru
          _
        // Predicated region
        $region21: #{tpu_custom_call.1} parent=11 // pred_check
          %p223 = pneg %p170
        $region22: #{tpu_custom_call.1} parent=11 // pred_check_branch
          %225 = sbr.rel (%p223) target = $region24
        $region23: #{tpu_custom_call.1} parent=11 // pred_region
          _
        $region24: #{tpu_custom_call.1} parent=11 // pred_fallthru
          _
      $region12: #{tpu_custom_call.1} parent=5 // pred_fallthru
        _
      %p226 = scmp.lt.s32.totalorder %s20, 4
      // Predicated region
      $region25: #{tpu_custom_call.1} parent=5 // pred_check
        %p227 = pneg %p226
      $region26: #{tpu_custom_call.1} parent=5 // pred_check_branch
        %229 = sbr.rel (%p227) target = $region28
      $region27: #{tpu_custom_call.1} parent=5 // pred_region
        // Predicated region
        $region29: #{tpu_custom_call.1} parent=27 // pred_check
          %p230 = pneg %p67
        $region30: #{tpu_custom_call.1} parent=27 // pred_check_branch
          %232 = sbr.rel (%p230) target = $region32
        $region31: #{tpu_custom_call.1} parent=27 // pred_region
          %s233 = sand.u32 %s57, 1
          %s234 = scalar_lea.sflag [#allocation6], %s233
          %s235 = sand.u32 %s57, 1
          %s236 = smul.addr %s235, 8
          %s237 = scalar_lea.vmem [#allocation5], %s236
          %s238 = ssub.s32 1, %s27
          %s239 = smul.u32 %s28, %s238
          %s240 = smul.u32 %s29, %s238
          %s241 = smul.u32 2, %s240
          %s243 = ssub.s32 128, 128
          %244 = vsyncadd %s234, %s243
          %s245 = smul.addr %s239, 2
          %s246 = sadd.s32 %s241, %s245
          %s247 = smul.addr %s246, 64
          %s248 = scalar_lea.hbm %s0, %s247
          %s250 = sshll.u32 %s237, 4
          %s251 = int_to_ptr.vmem [resolvable:$true] %s250
          %253 = dma.hbm_to_vmem [thread:$0]  %s248, 128, %s251, %s234
        $region32: #{tpu_custom_call.1} parent=27 // pred_fallthru
          _
        // Predicated region
        $region33: #{tpu_custom_call.1} parent=27 // pred_check
          %p254 = pneg %p101
        $region34: #{tpu_custom_call.1} parent=27 // pred_check_branch
          %256 = sbr.rel (%p254) target = $region36
        $region35: #{tpu_custom_call.1} parent=27 // pred_region
          %s257 = sand.u32 %s91, 1
          %s258 = scalar_lea.sflag [#allocation9], %s257
          %s259 = sand.u32 %s91, 1
          %s260 = smul.addr %s259, 8
          %s261 = scalar_lea.vmem [#allocation8], %s260
          %s262 = ssub.s32 1, %s27
          %s263 = smul.u32 %s28, %s262
          %s264 = smul.u32 %s29, %s262
          %s265 = smul.u32 2, %s264
          %s267 = ssub.s32 128, 128
          %268 = vsyncadd %s258, %s267
          %s269 = smul.addr %s263, 2
          %s270 = sadd.s32 %s265, %s269
          %s271 = smul.addr %s270, 64
          %s272 = scalar_lea.hbm %s1, %s271
          %s274 = sshll.u32 %s261, 4
          %s275 = int_to_ptr.vmem [resolvable:$true] %s274
          %277 = dma.hbm_to_vmem [thread:$0]  %s272, 128, %s275, %s258
        $region36: #{tpu_custom_call.1} parent=27 // pred_fallthru
          _
      $region28: #{tpu_custom_call.1} parent=5 // pred_fallthru
        _
      %p278 = scmp.le.s32.totalorder 1, %s20
      %p279 = scmp.lt.s32.totalorder %s20, 5
      %p280 = pnand %p278, %p279
      %p281 = pneg %p280
      // Predicated region
      $region37: #{tpu_custom_call.1} parent=5 // pred_check
        _
      $region38: #{tpu_custom_call.1} parent=5 // pred_check_branch
        %283 = sbr.rel (%p280) target = $region40
      $region39: #{tpu_custom_call.1} parent=5 // pred_region
        %s284 = ssub.s32 %s20, 1
        %s285 = sand.u32 %s60, 1
        %s286 = scalar_lea.sflag [#allocation6], %s285
        %s287 = sand.u32 %s60, 1
        %s288 = smul.addr %s287, 8
        %s289 = scalar_lea.vmem [#allocation5], %s288
        // Predicated region
        $region41: #{tpu_custom_call.1} parent=39 // pred_check
          %p290 = pneg %p73
        $region42: #{tpu_custom_call.1} parent=39 // pred_check_branch
          %292 = sbr.rel (%p290) target = $region44
        $region43: #{tpu_custom_call.1} parent=39 // pred_region
          %293 = dma.done %s286, 128
        $region44: #{tpu_custom_call.1} parent=39 // pred_fallthru
          _
        %s294 = sand.u32 %s94, 1
        %s295 = scalar_lea.sflag [#allocation9], %s294
        %s296 = sand.u32 %s94, 1
        %s297 = smul.addr %s296, 8
        %s298 = scalar_lea.vmem [#allocation8], %s297
        // Predicated region
        $region45: #{tpu_custom_call.1} parent=39 // pred_check
          %p299 = pneg %p107
        $region46: #{tpu_custom_call.1} parent=39 // pred_check_branch
          %301 = sbr.rel (%p299) target = $region48
        $region47: #{tpu_custom_call.1} parent=39 // pred_region
          %302 = dma.done %s295, 128
        $region48: #{tpu_custom_call.1} parent=39 // pred_fallthru
          _
        %s303 = sand.u32 %s60, 1
        %s304 = scalar_lea.sflag [#allocation6], %s303
        %s305 = sand.u32 %s60, 1
        %s306 = smul.addr %s305, 8
        %s307 = scalar_lea.vmem [#allocation5], %s306
        %p308 = pneg %p73
        %p309 = pneg %p70
        %s310 = sand.u32 %s94, 1
        %s311 = scalar_lea.sflag [#allocation9], %s310
        %s312 = sand.u32 %s94, 1
        %s313 = smul.addr %s312, 8
        %s314 = scalar_lea.vmem [#allocation8], %s313
        %p315 = pneg %p107
        %p316 = pneg %p104
        %p317 = pneg %p128
        %p318 = pneg %p125
        %p319 = pneg %p149
        %p320 = pneg %p146
        %p321 = pneg %p170
        %p322 = pneg %p167
        %p323 = pneg %p202
        %p324 = pneg %p199
        %s325 = sand.u32 %s189, 1
        %s326 = scalar_lea.sflag [#allocation7], %s325
        %s327 = sand.u32 %s189, 1
        %s328 = smul.addr %s327, 8
        %s329 = scalar_lea.vmem [#allocation10], %s328
        %s330 = ssub.s32 1, %s30
        %s331 = smul.u32 %s31, %s330
        %s332 = smul.u32 %s32, %s330
        %s333 = smul.u32 2, %s332
        %s334 = ssub.s32 1, %s30
        %s335 = smul.u32 %s31, %s334
        %s336 = smul.u32 %s32, %s334
        %s337 = smul.u32 2, %s336
        %s338 = smul.u32 %s31, %s30
        %s339 = smul.u32 %s32, %s30
        %s340 = smul.u32 2, %s339
        %p341 = scmp.eq.s32.totalorder %s30, 0
        %p342 = scmp.eq.s32.totalorder %s31, 0
        %p343 = pnand %p341, %p342
        %p344 = pneg %p343
        %p345 = scmp.eq.s32.totalorder %s32, 0
        %p346 = pnand %p344, %p345
        %p347 = pneg %p346
        // Predicated region
        $region49: #{tpu_custom_call.1} parent=39 // pred_check
          _
        $region50: #{tpu_custom_call.1} parent=39 // pred_check_branch
          %349 = sbr.rel (%p346) target = $region52
        $region51: #{tpu_custom_call.1} parent=39 // pred_region
          %vm350 = vcmask 3072
          %351 = vst.msk [vmem:[#allocation2] sm:$0xf] %vm350, 0.0
          %352 = vst.msk [vmem:[#allocation3] sm:$0xf] %vm350, 0.0
        $region52: #{tpu_custom_call.1} parent=39 // pred_fallthru
          _
        %v353 = vld [vmem:[%s2] sm:$0xf]
        // Predicated region
        $region53: #{tpu_custom_call.1} parent=39 // pred_check
          %p354 = pneg %p341
        $region54: #{tpu_custom_call.1} parent=39 // pred_check_branch
          %356 = sbr.rel (%p354) target = $region56
        $region55: #{tpu_custom_call.1} parent=39 // pred_region
          %v357 = vld [vmem:[%s289] sm:$0xff]
          %v358 = vld [vmem:[%s298] sm:$0xff]
          %v359 = vsub.f32 %v357, %v358
          %v360 = vand.u32 2147483647, %v359
          %362 = vset.pattern.permute.xlu0 0
          %363 = vperm.xlu0 %362, %v353
          %v364 = vpop.permute.xlu0 %363
          %v367 = vlaneseq
          %v368 = vshrl.u32 %v367, 7
          %v369 = vsub.s32 0, %v368
          %v370 = vrot.slane %v360, %v369
          %v371 = vlaneseq
          %v372 = vshrl.u32 %v371, 7
          %v373 = vsub.s32 4, %v372
          %v374 = vrot.slane %v360, %v373
          %v377 = vlaneseq
          %v378 = vshrl.u32 %v377, 7
          %v379 = vsub.s32 0, %v378
          %v380 = vrot.slane %v370, %v379
          %v381 = vlaneseq
          %v382 = vshrl.u32 %v381, 7
          %v383 = vsub.s32 0, %v382
          %v384 = vrot.slane %v374, %v383
          %v385 = vmul.f32 %v364, %v380
          %v386 = vmul.f32 %v364, %v384
          %387 = vset.pattern.permute.xlu0 1
          %388 = vperm.xlu0 %387, %v353
          %v389 = vpop.permute.xlu0 %388
          %v391 = vlaneseq
          %v392 = vshrl.u32 %v391, 7
          %v393 = vsub.s32 1, %v392
          %v394 = vrot.slane %v360, %v393
          %v395 = vlaneseq
          %v396 = vshrl.u32 %v395, 7
          %v397 = vsub.s32 5, %v396
          %v398 = vrot.slane %v360, %v397
          %v401 = vlaneseq
          %v402 = vshrl.u32 %v401, 7
          %v403 = vsub.s32 1, %v402
          %v404 = vrot.slane %v394, %v403
          %v405 = vlaneseq
          %v406 = vshrl.u32 %v405, 7
          %v407 = vsub.s32 1, %v406
          %v408 = vrot.slane %v398, %v407
          %v409 = vmul.f32 %v389, %v404
          %v410 = vmul.f32 %v389, %v408
          %v411 = vadd.f32 %v385, %v409
          %v412 = vadd.f32 %v386, %v410
          %413 = vset.pattern.permute.xlu0 2
          %414 = vperm.xlu0 %413, %v353
          %v415 = vpop.permute.xlu0 %414
          %v417 = vlaneseq
          %v418 = vshrl.u32 %v417, 7
          %v419 = vsub.s32 2, %v418
          %v420 = vrot.slane %v360, %v419
          %v421 = vlaneseq
          %v422 = vshrl.u32 %v421, 7
          %v423 = vsub.s32 6, %v422
          %v424 = vrot.slane %v360, %v423
          %v427 = vlaneseq
          %v428 = vshrl.u32 %v427, 7
          %v429 = vsub.s32 2, %v428
          %v430 = vrot.slane %v420, %v429
          %v431 = vlaneseq
          %v432 = vshrl.u32 %v431, 7
          %v433 = vsub.s32 2, %v432
          %v434 = vrot.slane %v424, %v433
          %v435 = vmul.f32 %v415, %v430
          %v436 = vmul.f32 %v415, %v434
          %v437 = vadd.f32 %v411, %v435
          %v438 = vadd.f32 %v412, %v436
          %439 = vset.pattern.permute.xlu0 3
          %440 = vperm.xlu0 %439, %v353
          %v441 = vpop.permute.xlu0 %440
          %v443 = vlaneseq
          %v444 = vshrl.u32 %v443, 7
          %v445 = vsub.s32 3, %v444
          %v446 = vrot.slane %v360, %v445
          %v447 = vlaneseq
          %v448 = vshrl.u32 %v447, 7
          %v449 = vsub.s32 7, %v448
          %v450 = vrot.slane %v360, %v449
          %v453 = vlaneseq
          %v454 = vshrl.u32 %v453, 7
          %v455 = vsub.s32 3, %v454
          %v456 = vrot.slane %v446, %v455
          %v457 = vlaneseq
          %v458 = vshrl.u32 %v457, 7
          %v459 = vsub.s32 3, %v458
          %v460 = vrot.slane %v450, %v459
          %v461 = vmul.f32 %v441, %v456
          %v462 = vmul.f32 %v441, %v460
          %v463 = vadd.f32 %v437, %v461
          %v464 = vadd.f32 %v438, %v462
          %s465 = sadd.s32 %s31, %s32
          %v468 = vcombine.low %v463, %v464
          %s470 = smul.u32 %s465, 2
          %s471 = smul.addr %s470, 4
          %s472 = scalar_lea.vmem [#allocation4], %s471
          %473 = vst [vmem:[%s472] sm:$0xff] %v468
          %v474 = vld [vmem:[#allocation2] sm:$0xf]
          %vm475 = vcmask 1043456
          %v476 = vsel %vm475, %v463, 0.0
          %v477 = vsel %vm475, %v464, 0.0
          %v478 = vadd.f32 %v476, %v477
          %479 = vadd.xlane.f32.xlu0 %v478
          %v480 = vpop.xlane.xlu0 %479
          %v481 = vadd.f32 %v474, %v480
          %vm482 = vcmask 3072
          %483 = vst.msk [vmem:[#allocation2] sm:$0xf] %vm482, %v481
          %v484 = vld [vmem:[#allocation3] sm:$0xf]
          %v485 = vmul.f32 %v463, %v463
          %v486 = vmul.f32 %v464, %v464
          %v487 = vsel %vm475, %v485, 0.0
          %v488 = vsel %vm475, %v486, 0.0
          %v489 = vadd.f32 %v487, %v488
          %490 = vadd.xlane.f32.xlu0 %v489
          %v491 = vpop.xlane.xlu0 %490
          %v492 = vadd.f32 %v484, %v491
          %493 = vst.msk [vmem:[#allocation3] sm:$0xf] %vm482, %v492
        $region56: #{tpu_custom_call.1} parent=39 // pred_fallthru
          _
        %p494 = scmp.eq.s32.totalorder %s30, 1
        // Predicated region
        $region57: #{tpu_custom_call.1} parent=39 // pred_check
          %p495 = pneg %p494
        $region58: #{tpu_custom_call.1} parent=39 // pred_check_branch
          %497 = sbr.rel (%p495) target = $region60
        $region59: #{tpu_custom_call.1} parent=39 // pred_region
          %v498 = vld [vmem:[#allocation2] sm:$0xf]
          %v499 = vmul.f32 %v498, 0.001953125
          %v500 = vld [vmem:[#allocation3] sm:$0xf]
          %v501 = vmul.f32 %v500, 0.001953125
          %v502 = vmul.f32 %v499, %v499
          %v503 = vsub.f32 %v501, %v502
          %v504 = vadd.f32 %v503, 1e-05
          %v505 = vrsqrt.pop %v504
          %v506 = vld [vmem:[%s3] sm:$0xf]
          %v507 = vmul.f32 %v506, %v505
          %v508 = vld [vmem:[%s4] sm:$0xf]
          %v509 = vmul.f32 %v499, %v507
          %v510 = vsub.f32 %v508, %v509
          %s511 = sadd.s32 %s31, %s32
          %s512 = smul.u32 %s511, 2
          %s513 = smul.addr %s512, 4
          %s514 = scalar_lea.vmem [#allocation4], %s513
          %v515 = vld [vmem:[%s514] sm:$0xff]
          %517 = vset.pattern.permute.xlu0 0
          %518 = vperm.xlu0 %517, %v507
          %v519 = vpop.permute.xlu0 %518
          %v521 = vunpack.c.l.s4 839922192
          %v522 = vunpack.c.0.s8 %v521
          %v523 = vlaneseq
          %v524 = vshrl.u32 %v523, 7
          %v525 = vsub.s32 %v522, %v524
          %v526 = vrot.slane %v519, %v525
          %v528 = vmul.f32 %v515, %v526
          %530 = vset.pattern.permute.xlu0 0
          %531 = vperm.xlu0 %530, %v510
          %v532 = vpop.permute.xlu0 %531
          %v534 = vunpack.c.l.s4 839922192
          %v535 = vunpack.c.0.s8 %v534
          %v536 = vlaneseq
          %v537 = vshrl.u32 %v536, 7
          %v538 = vsub.s32 %v535, %v537
          %v539 = vrot.slane %v532, %v538
          %v541 = vadd.f32 %v528, %v539
          %v542 = vmax.f32 %v541, 0.0
          %543 = vst [vmem:[%s329] sm:$0xff] %v542
        $region60: #{tpu_custom_call.1} parent=39 // pred_fallthru
          _
        %s544 = sand.u32 %s189, 1
        %s545 = scalar_lea.sflag [#allocation7], %s544
        %s546 = sand.u32 %s189, 1
        %s547 = smul.addr %s546, 8
        %s548 = scalar_lea.vmem [#allocation10], %s547
        // Predicated region
        $region61: #{tpu_custom_call.1} parent=39 // pred_check
          %p549 = pneg %p199
        $region62: #{tpu_custom_call.1} parent=39 // pred_check_branch
          %551 = sbr.rel (%p549) target = $region64
        $region63: #{tpu_custom_call.1} parent=39 // pred_region
          %s552 = smul.u32 %s31, %s30
          %s553 = smul.u32 %s32, %s30
          %s554 = smul.u32 2, %s553
          %s556 = ssub.s32 128, 128
          %557 = vsyncadd %s545, %s556
          %s558 = smul.addr %s552, 2
          %s559 = sadd.s32 %s554, %s558
          %s560 = smul.addr %s559, 64
          %s561 = scalar_lea.hbm %s5, %s560
          %s563 = sshll.u32 %s548, 4
          %s564 = int_to_ptr.vmem [resolvable:$true] %s563
          %566 = dma.vmem_to_hbm [thread:$0]  %s564, 128, %s561, %s545
        $region64: #{tpu_custom_call.1} parent=39 // pred_fallthru
          _
      $region40: #{tpu_custom_call.1} parent=5 // pred_fallthru
        _
      %p567 = scmp.le.s32.totalorder 2, %s20
      // Predicated region
      $region65: #{tpu_custom_call.1} parent=5 // pred_check
        %p568 = pneg %p567
      $region66: #{tpu_custom_call.1} parent=5 // pred_check_branch
        %570 = sbr.rel (%p568) target = $region68
      $region67: #{tpu_custom_call.1} parent=5 // pred_region
        %s571 = ssub.s32 %s20, 2
        // Predicated region
        $region69: #{tpu_custom_call.1} parent=67 // pred_check
          %p572 = pneg %p205
        $region70: #{tpu_custom_call.1} parent=67 // pred_check_branch
          %574 = sbr.rel (%p572) target = $region72
        $region71: #{tpu_custom_call.1} parent=67 // pred_region
          %s575 = sand.u32 %s190, 1
          %s576 = scalar_lea.sflag [#allocation7], %s575
          %s577 = sand.u32 %s190, 1
          %s578 = smul.addr %s577, 8
          %s579 = scalar_lea.vmem [#allocation10], %s578
          %580 = dma.done %s576, 128
        $region72: #{tpu_custom_call.1} parent=67 // pred_fallthru
          _
      $region68: #{tpu_custom_call.1} parent=5 // pred_fallthru
        _
    $region6: #{tpu_custom_call.1} parent=1 // loop_footer
      %s24 = sadd.s32 1, %s20
    $region7: #{tpu_custom_call.1} parent=1 // loop_footer_branch
      %19 = sbr.rel target = $region3
    $region8: #{tpu_custom_call.1} parent=1 // loop_exit
      _
    %581 = vsyncpa [#allocation6], 1
    %s582 = scalar_lea.sflag [#allocation6], 1
    %583 = vsyncpa %s582, 1
    %584 = vsyncpa [#allocation9], 1
    %s585 = scalar_lea.sflag [#allocation9], 1
    %586 = vsyncpa %s585, 1
    %587 = vsyncpa [#allocation7], 1
    %s588 = scalar_lea.sflag [#allocation7], 1
    %589 = vsyncpa %s588, 1

</llo_original>
